<compile_context>
chip_gen: v7x
topology: tpu7x:2x2x1
jax: 0.10.0
libtpu: 0.0.40
codegen_flags: <defaults>
</compile_context>

<pallas_src>
import math
import functools

import jax
import jax.numpy as jnp
from jax.experimental import pallas as pl
from jax.experimental.pallas import tpu as pltpu


def _make_kernel(S, E, H):
    Dh = E // H
    eps = 1e-5

    def kernel(x_ref, vec_ref, fcw_ref, wqkv_ref, opw_ref, out_ref):
        # One batch element per program: (S, E) slab.
        x = x_ref[...].astype(jnp.float32)

        # packed 1-D params, one (9, E) f32 slab: rows are
        # [g1, b1, fcb, bq(*scale), bk, bv, opb, g2, b2]
        g1 = vec_ref[0:1, :]
        b1 = vec_ref[1:2, :]
        fcb = vec_ref[2:3, :]
        bq = vec_ref[3:4, :]
        bk = vec_ref[4:5, :]
        bv = vec_ref[5:6, :]
        opb = vec_ref[6:7, :]
        g2 = vec_ref[7:8, :]
        b2 = vec_ref[8:9, :]

        # ---- LayerNorm 1 (f32 VPU) ----
        mu = jnp.mean(x, axis=-1, keepdims=True)
        var = jnp.mean((x - mu) ** 2, axis=-1, keepdims=True)
        xn = (x - mu) * jax.lax.rsqrt(var + eps) * g1 + b1

        # ---- Linear + ReLU: bf16 MXU operands, f32 accumulation ----
        h = jnp.dot(xn.astype(jnp.bfloat16), fcw_ref[...],
                    preferred_element_type=jnp.float32) + fcb
        h = jnp.maximum(h, 0.0)                                     # (S, E) f32

        # ---- Fused Q/K/V projection: one (S, 3E) matmul ----
        qkv = jnp.dot(h.astype(jnp.bfloat16), wqkv_ref[...],
                      preferred_element_type=jnp.float32)
        # 1/sqrt(Dh) already folded into the Q weight columns and bq in the wrapper.
        q = (qkv[:, 0:E] + bq).astype(jnp.bfloat16)
        k = (qkv[:, E:2 * E] + bk).astype(jnp.bfloat16)
        v = (qkv[:, 2 * E:3 * E] + bv).astype(jnp.bfloat16)

        # ---- Multi-head attention, per-batch (S, S) scores, no mask ----
        ctxs = []
        for hh in range(H):                                         # static unroll, H small
            sl = slice(hh * Dh, (hh + 1) * Dh)
            qh = q[:, sl]
            kh = k[:, sl]
            vh = v[:, sl]
            s = jax.lax.dot_general(                                # q @ k^T, no in-kernel .T
                qh, kh, (((1,), (1,)), ((), ())),
                preferred_element_type=jnp.float32)                 # (S, S) f32
            s = s - jnp.max(s, axis=-1, keepdims=True)
            p = jnp.exp(s)
            p = p * pl.reciprocal(jnp.sum(p, axis=-1, keepdims=True), approx=True)
            ctxs.append(jnp.dot(p.astype(jnp.bfloat16), vh,
                                preferred_element_type=jnp.float32))  # (S, Dh) f32

        # Lane-concatenate head contexts -> single K=E out-projection matmul.
        ctx = jnp.concatenate(ctxs, axis=-1)                        # (S, E) f32
        attn = jnp.dot(ctx.astype(jnp.bfloat16), opw_ref[...],
                       preferred_element_type=jnp.float32) + opb

        # ---- Residual + LayerNorm 2 (f32 VPU) ----
        y = h + attn
        mu2 = jnp.mean(y, axis=-1, keepdims=True)
        var2 = jnp.mean((y - mu2) ** 2, axis=-1, keepdims=True)
        y = (y - mu2) * jax.lax.rsqrt(var2 + eps) * g2 + b2

        out_ref[...] = y.astype(out_ref.dtype)

    return kernel


def prepare_params(params, num_heads):
    """One-time (outside the jitted steady-state path) weight packing:
    transpose, fuse QKV, fold the attention scale into Q, cast matmul weights to bf16."""
    g1, b1, fcw, fcb, ipw, ipb, opw, opb, g2, b2 = params
    E = fcw.shape[0]
    Dh = E // num_heads
    scale = 1.0 / math.sqrt(Dh)

    fcw_t = fcw.T.astype(jnp.bfloat16)                              # (E, E)
    w_qkv = jnp.concatenate(
        [ipw[0:E].T * scale, ipw[E:2 * E].T, ipw[2 * E:3 * E].T],
        axis=1).astype(jnp.bfloat16)                                # (E, 3E), scale folded into Q
    opw_t = opw.T.astype(jnp.bfloat16)                              # (E, E)

    vec = jnp.stack(
        [g1, b1, fcb, ipb[0:E] * scale, ipb[E:2 * E], ipb[2 * E:3 * E],
         opb, g2, b2], axis=0).astype(jnp.float32)                  # (9, E)
    return vec, fcw_t, w_qkv, opw_t


@functools.partial(jax.jit, static_argnames=("num_heads",))
def transformer_encoder(x, vec, fcw_t, w_qkv, opw_t, *, num_heads):
    B, S, E = x.shape
    x_flat = x.reshape(B * S, E)

    kernel = _make_kernel(S, E, num_heads)
    out_flat = pl.pallas_call(
        kernel,
        out_shape=jax.ShapeDtypeStruct((B * S, E), x.dtype),
        grid=(B,),                                                  # one batch element / program
        in_specs=[
            pl.BlockSpec((S, E), lambda b: (b, 0)),                 # x tile for this batch
            pl.BlockSpec((9, E), lambda b: (0, 0)),                 # packed 1-D params (resident)
            pl.BlockSpec((E, E), lambda b: (0, 0)),                 # fc weight (pre-T, bf16)
            pl.BlockSpec((E, 3 * E), lambda b: (0, 0)),             # fused QKV weight (pre-T, bf16)
            pl.BlockSpec((E, E), lambda b: (0, 0)),                 # out-proj weight (pre-T, bf16)
        ],
        out_specs=pl.BlockSpec((S, E), lambda b: (b, 0)),
        compiler_params=pltpu.CompilerParams(
            dimension_semantics=("parallel",),                      # both v7x TCs + pipelining
            vmem_limit_bytes=32 * 1024 * 1024),
    )(x_flat, vec, fcw_t, w_qkv, opw_t)
    return out_flat.reshape(B, S, E)


def _reference(x, params, num_heads):
    """Pure-JAX reference mirroring PyTorch semantics (eval mode)."""
    g1, b1, fcw, fcb, ipw, ipb, opw, opb, g2, b2 = params
    eps = 1e-5
    E = x.shape[-1]
    Dh = E // num_heads

    def ln(v, g, b):
        mu = jnp.mean(v, axis=-1, keepdims=True)
        var = jnp.mean((v - mu) ** 2, axis=-1, keepdims=True)
        return (v - mu) / jnp.sqrt(var + eps) * g + b

    h = ln(x, g1, b1)
    h = jax.nn.relu(h @ fcw.T + fcb)
    q = h @ ipw[:E].T + ipb[:E]
    k = h @ ipw[E:2 * E].T + ipb[E:2 * E]
    v = h @ ipw[2 * E:].T + ipb[2 * E:]
    B, S, _ = h.shape

    def split(t):
        return t.reshape(B, S, num_heads, Dh).transpose(0, 2, 1, 3)

    qh, kh, vh = split(q), split(k), split(v)
    s = jnp.einsum("bhqd,bhkd->bhqk", qh, kh) / math.sqrt(Dh)
    p = jax.nn.softmax(s, axis=-1)
    a = jnp.einsum("bhqk,bhkd->bhqd", p, vh).transpose(0, 2, 1, 3).reshape(B, S, E)
    a = a @ opw.T + opb
    return ln(h + a, g2, b2)


if __name__ == "__main__":
    B, S, E, H = 2, 8, 32, 4
    key = jax.random.PRNGKey(0)
    kx, k1, k2, k3, k4, k5, k6 = jax.random.split(key, 7)

    x = jax.random.normal(kx, (B, S, E), dtype=jnp.float32)

    params = (
        jnp.ones((E,), jnp.float32),                           # ln1 gamma
        jnp.zeros((E,), jnp.float32),                          # ln1 beta
        0.05 * jax.random.normal(k1, (E, E), jnp.float32),     # fc weight
        0.05 * jax.random.normal(k2, (E,), jnp.float32),       # fc bias
        0.05 * jax.random.normal(k3, (3 * E, E), jnp.float32), # in_proj_weight
        0.05 * jax.random.normal(k4, (3 * E,), jnp.float32),   # in_proj_bias
        0.05 * jax.random.normal(k5, (E, E), jnp.float32),     # out_proj weight
        0.05 * jax.random.normal(k6, (E,), jnp.float32),       # out_proj bias
        jnp.ones((E,), jnp.float32),                           # ln2 gamma
        jnp.zeros((E,), jnp.float32),                          # ln2 beta
    )

    # One-time weight prep (outside the jitted steady-state path).
    vec, fcw_t, w_qkv, opw_t = prepare_params(params, H)
    vec, fcw_t, w_qkv, opw_t = jax.block_until_ready((vec, fcw_t, w_qkv, opw_t))

    out = transformer_encoder(x, vec, fcw_t, w_qkv, opw_t, num_heads=H)
    out = jax.block_until_ready(out)

    ref = _reference(x, params, H)
    assert out.shape == (B, S, E)
    # Tolerance accounts for bf16 MXU operands (f32 accumulation) and the EUP
    # approximate-reciprocal softmax denominator.
    assert jnp.allclose(out, ref, atol=2e-2, rtol=2e-2), "mismatch vs reference"
    print("KERNEL_OK")
</pallas_src>

<mosaic_0001>
module attributes {stable_mosaic.version = 11 : i64} {
  func.func @kernel(%arg0: i32, %arg1: memref<8x32xf32, #tpu.memory_space<vmem>>, %arg2: memref<9x32xf32, #tpu.memory_space<vmem>>, %arg3: memref<32x32xbf16, #tpu.memory_space<vmem>>, %arg4: memref<32x96xbf16, #tpu.memory_space<vmem>>, %arg5: memref<32x32xbf16, #tpu.memory_space<vmem>>, %arg6: memref<8x32xf32, #tpu.memory_space<vmem>>) attributes {dimension_semantics = [#tpu.dimension_semantics<parallel>], iteration_bounds = array<i64: 2>, scalar_prefetch = 0 : i64, scratch_operands = 0 : i64, tpu.core_type = #tpu.core_type<tc>, window_params = [{transform_indices = @transform_0, window_bounds = array<i64: 8, 32>}, {pipeline_mode = #tpu.pipeline_mode<synchronous>, transform_indices = @transform_1, window_bounds = array<i64: 9, 32>}, {pipeline_mode = #tpu.pipeline_mode<synchronous>, transform_indices = @transform_2, window_bounds = array<i64: 32, 32>}, {pipeline_mode = #tpu.pipeline_mode<synchronous>, transform_indices = @transform_3, window_bounds = array<i64: 32, 96>}, {pipeline_mode = #tpu.pipeline_mode<synchronous>, transform_indices = @transform_4, window_bounds = array<i64: 32, 32>}, {transform_indices = @transform_5, window_bounds = array<i64: 8, 32>}]} {
    %c0 = arith.constant 0 : index
    %c0_0 = arith.constant 0 : index
    %0 = vector.load %arg1[%c0, %c0_0] : memref<8x32xf32, #tpu.memory_space<vmem>>, vector<8x32xf32>
    %c0_1 = arith.constant 0 : index
    %c0_2 = arith.constant 0 : index
    %1 = vector.load %arg2[%c0_1, %c0_2] : memref<9x32xf32, #tpu.memory_space<vmem>>, vector<1x32xf32>
    %c1 = arith.constant 1 : index
    %c0_3 = arith.constant 0 : index
    %2 = vector.load %arg2[%c1, %c0_3] : memref<9x32xf32, #tpu.memory_space<vmem>>, vector<1x32xf32>
    %c2 = arith.constant 2 : index
    %c0_4 = arith.constant 0 : index
    %3 = vector.load %arg2[%c2, %c0_4] : memref<9x32xf32, #tpu.memory_space<vmem>>, vector<1x32xf32>
    %c3 = arith.constant 3 : index
    %c0_5 = arith.constant 0 : index
    %4 = vector.load %arg2[%c3, %c0_5] : memref<9x32xf32, #tpu.memory_space<vmem>>, vector<1x32xf32>
    %c4 = arith.constant 4 : index
    %c0_6 = arith.constant 0 : index
    %5 = vector.load %arg2[%c4, %c0_6] : memref<9x32xf32, #tpu.memory_space<vmem>>, vector<1x32xf32>
    %c5 = arith.constant 5 : index
    %c0_7 = arith.constant 0 : index
    %6 = vector.load %arg2[%c5, %c0_7] : memref<9x32xf32, #tpu.memory_space<vmem>>, vector<1x32xf32>
    %c6 = arith.constant 6 : index
    %c0_8 = arith.constant 0 : index
    %7 = vector.load %arg2[%c6, %c0_8] : memref<9x32xf32, #tpu.memory_space<vmem>>, vector<1x32xf32>
    %c7 = arith.constant 7 : index
    %c0_9 = arith.constant 0 : index
    %8 = vector.load %arg2[%c7, %c0_9] : memref<9x32xf32, #tpu.memory_space<vmem>>, vector<1x32xf32>
    %c8 = arith.constant 8 : index
    %c0_10 = arith.constant 0 : index
    %9 = vector.load %arg2[%c8, %c0_10] : memref<9x32xf32, #tpu.memory_space<vmem>>, vector<1x32xf32>
    %cst = arith.constant dense<0.000000e+00> : vector<8xf32>
    %10 = vector.multi_reduction <add>, %0, %cst [1] : vector<8x32xf32> to vector<8xf32>
    %11 = vector.shape_cast %10 : vector<8xf32> to vector<8x1xf32>
    %cst_11 = arith.constant 3.200000e+01 : f32
    %12 = vector.broadcast %cst_11 : f32 to vector<8x1xf32>
    %13 = arith.divf %11, %12 : vector<8x1xf32>
    %14 = vector.broadcast %13 : vector<8x1xf32> to vector<8x32xf32>
    %15 = arith.subf %0, %14 : vector<8x32xf32>
    %16 = arith.mulf %15, %15 : vector<8x32xf32>
    %cst_12 = arith.constant dense<0.000000e+00> : vector<8xf32>
    %17 = vector.multi_reduction <add>, %16, %cst_12 [1] : vector<8x32xf32> to vector<8xf32>
    %18 = vector.shape_cast %17 : vector<8xf32> to vector<8x1xf32>
    %cst_13 = arith.constant 3.200000e+01 : f32
    %19 = vector.broadcast %cst_13 : f32 to vector<8x1xf32>
    %20 = arith.divf %18, %19 : vector<8x1xf32>
    %21 = vector.broadcast %13 : vector<8x1xf32> to vector<8x32xf32>
    %22 = arith.subf %0, %21 : vector<8x32xf32>
    %cst_14 = arith.constant 9.99999974E-6 : f32
    %23 = vector.broadcast %cst_14 : f32 to vector<8x1xf32>
    %24 = arith.addf %20, %23 : vector<8x1xf32>
    %25 = math.rsqrt %24 : vector<8x1xf32>
    %26 = vector.broadcast %25 : vector<8x1xf32> to vector<8x32xf32>
    %27 = arith.mulf %22, %26 : vector<8x32xf32>
    %28 = vector.broadcast %1 : vector<1x32xf32> to vector<8x32xf32>
    %29 = arith.mulf %27, %28 : vector<8x32xf32>
    %30 = vector.broadcast %2 : vector<1x32xf32> to vector<8x32xf32>
    %31 = arith.addf %29, %30 : vector<8x32xf32>
    %32 = arith.truncf %31 : vector<8x32xf32> to vector<8x32xbf16>
    %c0_15 = arith.constant 0 : index
    %c0_16 = arith.constant 0 : index
    %33 = vector.load %arg3[%c0_15, %c0_16] : memref<32x32xbf16, #tpu.memory_space<vmem>>, vector<32x32xbf16>
    %cst_17 = arith.constant dense<0.000000e+00> : vector<8x32xf32>
    %34 = tpu.matmul %32, %33, %cst_17 {dimension_numbers = #tpu.dot_dimension_numbers<[1], [0], [0], [1], [0, 0, 1, 1], [], []>} : vector<8x32xbf16>, vector<32x32xbf16>, vector<8x32xf32> -> vector<8x32xf32>
    %35 = vector.broadcast %3 : vector<1x32xf32> to vector<8x32xf32>
    %36 = arith.addf %34, %35 : vector<8x32xf32>
    %cst_18 = arith.constant 0.000000e+00 : f32
    %37 = vector.broadcast %cst_18 : f32 to vector<8x32xf32>
    %38 = arith.maximumf %36, %37 : vector<8x32xf32>
    %39 = arith.truncf %38 : vector<8x32xf32> to vector<8x32xbf16>
    %c0_19 = arith.constant 0 : index
    %c0_20 = arith.constant 0 : index
    %40 = vector.load %arg4[%c0_19, %c0_20] : memref<32x96xbf16, #tpu.memory_space<vmem>>, vector<32x96xbf16>
    %cst_21 = arith.constant dense<0.000000e+00> : vector<8x96xf32>
    %41 = tpu.matmul %39, %40, %cst_21 {dimension_numbers = #tpu.dot_dimension_numbers<[1], [0], [0], [1], [0, 0, 1, 1], [], []>} : vector<8x32xbf16>, vector<32x96xbf16>, vector<8x96xf32> -> vector<8x96xf32>
    %42 = vector.extract_strided_slice %41 {offsets = [0, 0], sizes = [8, 32], strides = [1, 1]} : vector<8x96xf32> to vector<8x32xf32>
    %43 = vector.broadcast %4 : vector<1x32xf32> to vector<8x32xf32>
    %44 = arith.addf %42, %43 : vector<8x32xf32>
    %45 = arith.truncf %44 : vector<8x32xf32> to vector<8x32xbf16>
    %46 = vector.extract_strided_slice %41 {offsets = [0, 32], sizes = [8, 32], strides = [1, 1]} : vector<8x96xf32> to vector<8x32xf32>
    %47 = vector.broadcast %5 : vector<1x32xf32> to vector<8x32xf32>
    %48 = arith.addf %46, %47 : vector<8x32xf32>
    %49 = arith.truncf %48 : vector<8x32xf32> to vector<8x32xbf16>
    %50 = vector.extract_strided_slice %41 {offsets = [0, 64], sizes = [8, 32], strides = [1, 1]} : vector<8x96xf32> to vector<8x32xf32>
    %51 = vector.broadcast %6 : vector<1x32xf32> to vector<8x32xf32>
    %52 = arith.addf %50, %51 : vector<8x32xf32>
    %53 = arith.truncf %52 : vector<8x32xf32> to vector<8x32xbf16>
    %54 = vector.extract_strided_slice %45 {offsets = [0, 0], sizes = [8, 8], strides = [1, 1]} : vector<8x32xbf16> to vector<8x8xbf16>
    %55 = vector.extract_strided_slice %49 {offsets = [0, 0], sizes = [8, 8], strides = [1, 1]} : vector<8x32xbf16> to vector<8x8xbf16>
    %56 = vector.extract_strided_slice %53 {offsets = [0, 0], sizes = [8, 8], strides = [1, 1]} : vector<8x32xbf16> to vector<8x8xbf16>
    %cst_22 = arith.constant dense<0.000000e+00> : vector<8x8xf32>
    %57 = tpu.matmul %54, %55, %cst_22 {dimension_numbers = #tpu.dot_dimension_numbers<[1], [1], [0], [0], [0, 0, 1, 0], [], []>} : vector<8x8xbf16>, vector<8x8xbf16>, vector<8x8xf32> -> vector<8x8xf32>
    %cst_23 = arith.constant dense<0xFF800000> : vector<8xf32>
    %58 = vector.multi_reduction <maximumf>, %57, %cst_23 [1] : vector<8x8xf32> to vector<8xf32>
    %59 = vector.shape_cast %58 : vector<8xf32> to vector<8x1xf32>
    %60 = vector.broadcast %59 : vector<8x1xf32> to vector<8x8xf32>
    %61 = arith.subf %57, %60 : vector<8x8xf32>
    %62 = math.exp %61 : vector<8x8xf32>
    %cst_24 = arith.constant dense<0.000000e+00> : vector<8xf32>
    %63 = vector.multi_reduction <add>, %62, %cst_24 [1] : vector<8x8xf32> to vector<8xf32>
    %64 = vector.shape_cast %63 : vector<8xf32> to vector<8x1xf32>
    %65 = tpu.reciprocal %64 {approx = true} : vector<8x1xf32> -> vector<8x1xf32>
    %66 = vector.broadcast %65 : vector<8x1xf32> to vector<8x8xf32>
    %67 = arith.mulf %62, %66 : vector<8x8xf32>
    %68 = arith.truncf %67 : vector<8x8xf32> to vector<8x8xbf16>
    %cst_25 = arith.constant dense<0.000000e+00> : vector<8x8xf32>
    %69 = tpu.matmul %68, %56, %cst_25 {dimension_numbers = #tpu.dot_dimension_numbers<[1], [0], [0], [1], [0, 0, 1, 1], [], []>} : vector<8x8xbf16>, vector<8x8xbf16>, vector<8x8xf32> -> vector<8x8xf32>
    %70 = vector.extract_strided_slice %45 {offsets = [0, 8], sizes = [8, 8], strides = [1, 1]} : vector<8x32xbf16> to vector<8x8xbf16>
    %71 = vector.extract_strided_slice %49 {offsets = [0, 8], sizes = [8, 8], strides = [1, 1]} : vector<8x32xbf16> to vector<8x8xbf16>
    %72 = vector.extract_strided_slice %53 {offsets = [0, 8], sizes = [8, 8], strides = [1, 1]} : vector<8x32xbf16> to vector<8x8xbf16>
    %cst_26 = arith.constant dense<0.000000e+00> : vector<8x8xf32>
    %73 = tpu.matmul %70, %71, %cst_26 {dimension_numbers = #tpu.dot_dimension_numbers<[1], [1], [0], [0], [0, 0, 1, 0], [], []>} : vector<8x8xbf16>, vector<8x8xbf16>, vector<8x8xf32> -> vector<8x8xf32>
    %cst_27 = arith.constant dense<0xFF800000> : vector<8xf32>
    %74 = vector.multi_reduction <maximumf>, %73, %cst_27 [1] : vector<8x8xf32> to vector<8xf32>
    %75 = vector.shape_cast %74 : vector<8xf32> to vector<8x1xf32>
    %76 = vector.broadcast %75 : vector<8x1xf32> to vector<8x8xf32>
    %77 = arith.subf %73, %76 : vector<8x8xf32>
    %78 = math.exp %77 : vector<8x8xf32>
    %cst_28 = arith.constant dense<0.000000e+00> : vector<8xf32>
    %79 = vector.multi_reduction <add>, %78, %cst_28 [1] : vector<8x8xf32> to vector<8xf32>
    %80 = vector.shape_cast %79 : vector<8xf32> to vector<8x1xf32>
    %81 = tpu.reciprocal %80 {approx = true} : vector<8x1xf32> -> vector<8x1xf32>
    %82 = vector.broadcast %81 : vector<8x1xf32> to vector<8x8xf32>
    %83 = arith.mulf %78, %82 : vector<8x8xf32>
    %84 = arith.truncf %83 : vector<8x8xf32> to vector<8x8xbf16>
    %cst_29 = arith.constant dense<0.000000e+00> : vector<8x8xf32>
    %85 = tpu.matmul %84, %72, %cst_29 {dimension_numbers = #tpu.dot_dimension_numbers<[1], [0], [0], [1], [0, 0, 1, 1], [], []>} : vector<8x8xbf16>, vector<8x8xbf16>, vector<8x8xf32> -> vector<8x8xf32>
    %86 = vector.extract_strided_slice %45 {offsets = [0, 16], sizes = [8, 8], strides = [1, 1]} : vector<8x32xbf16> to vector<8x8xbf16>
    %87 = vector.extract_strided_slice %49 {offsets = [0, 16], sizes = [8, 8], strides = [1, 1]} : vector<8x32xbf16> to vector<8x8xbf16>
    %88 = vector.extract_strided_slice %53 {offsets = [0, 16], sizes = [8, 8], strides = [1, 1]} : vector<8x32xbf16> to vector<8x8xbf16>
    %cst_30 = arith.constant dense<0.000000e+00> : vector<8x8xf32>
    %89 = tpu.matmul %86, %87, %cst_30 {dimension_numbers = #tpu.dot_dimension_numbers<[1], [1], [0], [0], [0, 0, 1, 0], [], []>} : vector<8x8xbf16>, vector<8x8xbf16>, vector<8x8xf32> -> vector<8x8xf32>
    %cst_31 = arith.constant dense<0xFF800000> : vector<8xf32>
    %90 = vector.multi_reduction <maximumf>, %89, %cst_31 [1] : vector<8x8xf32> to vector<8xf32>
    %91 = vector.shape_cast %90 : vector<8xf32> to vector<8x1xf32>
    %92 = vector.broadcast %91 : vector<8x1xf32> to vector<8x8xf32>
    %93 = arith.subf %89, %92 : vector<8x8xf32>
    %94 = math.exp %93 : vector<8x8xf32>
    %cst_32 = arith.constant dense<0.000000e+00> : vector<8xf32>
    %95 = vector.multi_reduction <add>, %94, %cst_32 [1] : vector<8x8xf32> to vector<8xf32>
    %96 = vector.shape_cast %95 : vector<8xf32> to vector<8x1xf32>
    %97 = tpu.reciprocal %96 {approx = true} : vector<8x1xf32> -> vector<8x1xf32>
    %98 = vector.broadcast %97 : vector<8x1xf32> to vector<8x8xf32>
    %99 = arith.mulf %94, %98 : vector<8x8xf32>
    %100 = arith.truncf %99 : vector<8x8xf32> to vector<8x8xbf16>
    %cst_33 = arith.constant dense<0.000000e+00> : vector<8x8xf32>
    %101 = tpu.matmul %100, %88, %cst_33 {dimension_numbers = #tpu.dot_dimension_numbers<[1], [0], [0], [1], [0, 0, 1, 1], [], []>} : vector<8x8xbf16>, vector<8x8xbf16>, vector<8x8xf32> -> vector<8x8xf32>
    %102 = vector.extract_strided_slice %45 {offsets = [0, 24], sizes = [8, 8], strides = [1, 1]} : vector<8x32xbf16> to vector<8x8xbf16>
    %103 = vector.extract_strided_slice %49 {offsets = [0, 24], sizes = [8, 8], strides = [1, 1]} : vector<8x32xbf16> to vector<8x8xbf16>
    %104 = vector.extract_strided_slice %53 {offsets = [0, 24], sizes = [8, 8], strides = [1, 1]} : vector<8x32xbf16> to vector<8x8xbf16>
    %cst_34 = arith.constant dense<0.000000e+00> : vector<8x8xf32>
    %105 = tpu.matmul %102, %103, %cst_34 {dimension_numbers = #tpu.dot_dimension_numbers<[1], [1], [0], [0], [0, 0, 1, 0], [], []>} : vector<8x8xbf16>, vector<8x8xbf16>, vector<8x8xf32> -> vector<8x8xf32>
    %cst_35 = arith.constant dense<0xFF800000> : vector<8xf32>
    %106 = vector.multi_reduction <maximumf>, %105, %cst_35 [1] : vector<8x8xf32> to vector<8xf32>
    %107 = vector.shape_cast %106 : vector<8xf32> to vector<8x1xf32>
    %108 = vector.broadcast %107 : vector<8x1xf32> to vector<8x8xf32>
    %109 = arith.subf %105, %108 : vector<8x8xf32>
    %110 = math.exp %109 : vector<8x8xf32>
    %cst_36 = arith.constant dense<0.000000e+00> : vector<8xf32>
    %111 = vector.multi_reduction <add>, %110, %cst_36 [1] : vector<8x8xf32> to vector<8xf32>
    %112 = vector.shape_cast %111 : vector<8xf32> to vector<8x1xf32>
    %113 = tpu.reciprocal %112 {approx = true} : vector<8x1xf32> -> vector<8x1xf32>
    %114 = vector.broadcast %113 : vector<8x1xf32> to vector<8x8xf32>
    %115 = arith.mulf %110, %114 : vector<8x8xf32>
    %116 = arith.truncf %115 : vector<8x8xf32> to vector<8x8xbf16>
    %cst_37 = arith.constant dense<0.000000e+00> : vector<8x8xf32>
    %117 = tpu.matmul %116, %104, %cst_37 {dimension_numbers = #tpu.dot_dimension_numbers<[1], [0], [0], [1], [0, 0, 1, 1], [], []>} : vector<8x8xbf16>, vector<8x8xbf16>, vector<8x8xf32> -> vector<8x8xf32>
    %118 = tpu.concatenate %69, %85, %101, %117 in 1 : vector<8x8xf32>, vector<8x8xf32>, vector<8x8xf32>, vector<8x8xf32> -> vector<8x32xf32>
    %119 = arith.truncf %118 : vector<8x32xf32> to vector<8x32xbf16>
    %c0_38 = arith.constant 0 : index
    %c0_39 = arith.constant 0 : index
    %120 = vector.load %arg5[%c0_38, %c0_39] : memref<32x32xbf16, #tpu.memory_space<vmem>>, vector<32x32xbf16>
    %cst_40 = arith.constant dense<0.000000e+00> : vector<8x32xf32>
    %121 = tpu.matmul %119, %120, %cst_40 {dimension_numbers = #tpu.dot_dimension_numbers<[1], [0], [0], [1], [0, 0, 1, 1], [], []>} : vector<8x32xbf16>, vector<32x32xbf16>, vector<8x32xf32> -> vector<8x32xf32>
    %122 = vector.broadcast %7 : vector<1x32xf32> to vector<8x32xf32>
    %123 = arith.addf %121, %122 : vector<8x32xf32>
    %124 = arith.addf %38, %123 : vector<8x32xf32>
    %cst_41 = arith.constant dense<0.000000e+00> : vector<8xf32>
    %125 = vector.multi_reduction <add>, %124, %cst_41 [1] : vector<8x32xf32> to vector<8xf32>
    %126 = vector.shape_cast %125 : vector<8xf32> to vector<8x1xf32>
    %cst_42 = arith.constant 3.200000e+01 : f32
    %127 = vector.broadcast %cst_42 : f32 to vector<8x1xf32>
    %128 = arith.divf %126, %127 : vector<8x1xf32>
    %129 = vector.broadcast %128 : vector<8x1xf32> to vector<8x32xf32>
    %130 = arith.subf %124, %129 : vector<8x32xf32>
    %131 = arith.mulf %130, %130 : vector<8x32xf32>
    %cst_43 = arith.constant dense<0.000000e+00> : vector<8xf32>
    %132 = vector.multi_reduction <add>, %131, %cst_43 [1] : vector<8x32xf32> to vector<8xf32>
    %133 = vector.shape_cast %132 : vector<8xf32> to vector<8x1xf32>
    %cst_44 = arith.constant 3.200000e+01 : f32
    %134 = vector.broadcast %cst_44 : f32 to vector<8x1xf32>
    %135 = arith.divf %133, %134 : vector<8x1xf32>
    %136 = vector.broadcast %128 : vector<8x1xf32> to vector<8x32xf32>
    %137 = arith.subf %124, %136 : vector<8x32xf32>
    %cst_45 = arith.constant 9.99999974E-6 : f32
    %138 = vector.broadcast %cst_45 : f32 to vector<8x1xf32>
    %139 = arith.addf %135, %138 : vector<8x1xf32>
    %140 = math.rsqrt %139 : vector<8x1xf32>
    %141 = vector.broadcast %140 : vector<8x1xf32> to vector<8x32xf32>
    %142 = arith.mulf %137, %141 : vector<8x32xf32>
    %143 = vector.broadcast %8 : vector<1x32xf32> to vector<8x32xf32>
    %144 = arith.mulf %142, %143 : vector<8x32xf32>
    %145 = vector.broadcast %9 : vector<1x32xf32> to vector<8x32xf32>
    %146 = arith.addf %144, %145 : vector<8x32xf32>
    %c0_46 = arith.constant 0 : index
    %c0_47 = arith.constant 0 : index
    %147 = vector.load %arg6[%c0_46, %c0_47] : memref<8x32xf32, #tpu.memory_space<vmem>>, vector<8x32xf32>
    tpu.vector_store %arg6[%c0_46, %c0_47], %146 {strides = array<i32>} : memref<8x32xf32, #tpu.memory_space<vmem>>, vector<8x32xf32>,
    return
  }
  func.func @transform_0(%arg0: i32) -> (i32, i32) {
    %c0_i32 = arith.constant 0 : i32
    %c0_i32_0 = arith.constant 0 : i32
    return %arg0, %c0_i32 : i32, i32
  }
  func.func @transform_1(%arg0: i32) -> (i32, i32) {
    %c0_i32 = arith.constant 0 : i32
    %c0_i32_0 = arith.constant 0 : i32
    %c0_i32_1 = arith.constant 0 : i32
    return %c0_i32, %c0_i32_0 : i32, i32
  }
  func.func @transform_2(%arg0: i32) -> (i32, i32) {
    %c0_i32 = arith.constant 0 : i32
    %c0_i32_0 = arith.constant 0 : i32
    %c0_i32_1 = arith.constant 0 : i32
    return %c0_i32, %c0_i32_0 : i32, i32
  }
  func.func @transform_3(%arg0: i32) -> (i32, i32) {
    %c0_i32 = arith.constant 0 : i32
    %c0_i32_0 = arith.constant 0 : i32
    %c0_i32_1 = arith.constant 0 : i32
    return %c0_i32, %c0_i32_0 : i32, i32
  }
  func.func @transform_4(%arg0: i32) -> (i32, i32) {
    %c0_i32 = arith.constant 0 : i32
    %c0_i32_0 = arith.constant 0 : i32
    %c0_i32_1 = arith.constant 0 : i32
    return %c0_i32, %c0_i32_0 : i32, i32
  }
  func.func @transform_5(%arg0: i32) -> (i32, i32) {
    %c0_i32 = arith.constant 0 : i32
    %c0_i32_0 = arith.constant 0 : i32
    return %arg0, %c0_i32 : i32, i32
  }
}

</mosaic_0001>

<llo_original>
// kernel: transformer_encoder.1
$region0: #{transformer_encoder.1}
  #allocation0 [shape = 'u32[]', space=smem, size = 0x4, offset = 0x4, fixed_abs, tag = 'smem constant byte address 0x4 - core index']
  #allocation1 [shape = 'u32[144,128]{1,0:T(1,128)}', space=vmem, size = 0x12000, scoped, tag = 'internal scratch']
  %s0 = inlined_call_operand.hbm [shape: f32[16,32], index: 0, kind: input, shape index: {}]
  %s1 = inlined_call_operand.hbm [shape: f32[9,32], index: 1, kind: input, shape index: {}]
  %s2 = inlined_call_operand.hbm [shape: bf16[32,32], index: 2, kind: input, shape index: {}]
  %s3 = inlined_call_operand.hbm [shape: bf16[32,96], index: 3, kind: input, shape index: {}]
  %s4 = inlined_call_operand.vmem [shape: bf16[32,32], index: 4, kind: input, shape index: {}]
  %s5 = inlined_call_operand.hbm [shape: f32[16,32], index: 5, kind: output, shape index: {}]
  %s6 = sld [smem:[#allocation0]]
  $region69: #{transformer_encoder.1} parent=0
    _
  %s8 = ssub.s32 1, %s6
  %s9 = scalar_select 0, %s8, %s6
  $region1: #{transformer_encoder.1} parent=0
    #allocation2 [shape = 'u8[8192]{0}', space=vmem, size = 0x2000, scoped, tag = 'input window, operand 0']
    #allocation3 [shape = 's32[2]{0}', space=sflag, size = 0x8, scoped, tag = 'scoped memory for transformer_encoder.1']
    #allocation4 [shape = 's32[2]{0}', space=sflag, size = 0x8, scoped, tag = 'scoped memory for transformer_encoder.1']
    #allocation5 [shape = 'u8[8192]{0}', space=vmem, size = 0x2000, scoped, tag = 'input window, operand 1, single buffered']
    #allocation6 [shape = 's32[1]{0}', space=sflag, size = 0x4, scoped, tag = 'scoped memory for transformer_encoder.1']
    #allocation7 [shape = 'u8[8192]{0}', space=vmem, size = 0x2000, scoped, tag = 'input window, operand 2, single buffered']
    #allocation8 [shape = 'u8[8192]{0}', space=vmem, size = 0x2000, scoped, tag = 'input window, operand 3, single buffered']
    #allocation9 [shape = 's32[1]{0}', space=sflag, size = 0x4, scoped, tag = 'scoped memory for transformer_encoder.1']
    #allocation10 [shape = 'u8[8192]{0}', space=vmem, size = 0x2000, scoped, tag = 'output window, operand 0']
    %10 = vsyncpa [#allocation3], 0
    %s11 = scalar_lea.sflag [#allocation3], 1
    %12 = vsyncpa %s11, 0
    %13 = vsyncpa [#allocation6], 0
    %14 = vsyncpa [#allocation9], 0
    %15 = vsyncpa [#allocation4], 0
    %s16 = scalar_lea.sflag [#allocation4], 1
    %17 = vsyncpa %s16, 0
    loop: start=0, step=1, limit=4
    $region2: #{transformer_encoder.1} parent=1 // loop_pre_header
      _
    $region3: #{transformer_encoder.1} parent=1 // loop_header
      %s19 = sphi 0, %s23
      %p20 = scmp.ge.s32.totalorder %s19, 4
      %s29 = sphi 0, %s31
      %s32 = sphi 0, %s29
      %s33 = sphi 0, %s32
      %s49 = sphi 0, %s33
      %s53 = sphi 0, %s53
      %s55 = sphi 0, %s53
      %s56 = sphi 0, %s55
      %s70 = sphi 0, %s56
      %s74 = sphi 0, %s74
      %s76 = sphi 0, %s74
      %s77 = sphi 0, %s76
      %s91 = sphi 0, %s77
      %s95 = sphi 0, %s95
      %s97 = sphi 0, %s95
      %s98 = sphi 0, %s97
      %s112 = sphi 0, %s98
      %s116 = sphi 0, %s116
      %s118 = sphi 0, %s116
      %s119 = sphi 0, %s118
      %s133 = sphi 0, %s119
      %s139 = sphi 0, %s141
      %s142 = sphi 0, %s139
      %s143 = sphi 0, %s142
      %s159 = sphi 0, %s143
    $region4: #{transformer_encoder.1} parent=1 // loop_header_branch
      %22 = sbr.rel (%p20) target = $region8
    $region5: #{transformer_encoder.1} parent=1 // loop_body
      %s24 = ssub.s32 %s19, 1
      %s25 = ssub.s32 %s19, 2
      %s26 = sadd.s32 %s19, 1
      %s27 = ssub.s32 %s19, %s26
      %p28 = scmp.eq.s32.totalorder %s27, 0
      %s30 = sadd.s32 %s29, 1
      %s31 = scalar_select %p28, %s29, %s30
      %p34 = pneg %p28
      %p35 = scmp.eq.s32.totalorder %s19, 1
      %p36 = por %p34, %p35
      %p37 = scmp.ne.s32.totalorder %s29, %s32
      %p38 = scmp.eq.s32.totalorder %s19, 0
      %p39 = por %p37, %p38
      %p40 = scmp.ne.s32.totalorder %s29, %s32
      %p41 = scmp.eq.s32.totalorder %s24, 1
      %p42 = por %p40, %p41
      %p43 = scmp.ne.s32.totalorder %s32, %s33
      %p44 = scmp.eq.s32.totalorder %s24, 0
      %p45 = por %p43, %p44
      %p46 = scmp.ne.s32.totalorder %s32, %s33
      %p47 = scmp.eq.s32.totalorder %s25, 1
      %p48 = por %p46, %p47
      %p50 = scmp.ne.s32.totalorder %s33, %s49
      %p51 = scmp.eq.s32.totalorder %s25, 0
      %p52 = por %p50, %p51
      %s54 = sadd.s32 %s53, 1
      %p57 = scmp.eq.s32.totalorder %s19, 1
      %p58 = scmp.ne.s32.totalorder %s53, %s55
      %p59 = scmp.eq.s32.totalorder %s19, 0
      %p60 = por %p58, %p59
      %p61 = scmp.ne.s32.totalorder %s53, %s55
      %p62 = scmp.eq.s32.totalorder %s24, 1
      %p63 = por %p61, %p62
      %p64 = scmp.ne.s32.totalorder %s55, %s56
      %p65 = scmp.eq.s32.totalorder %s24, 0
      %p66 = por %p64, %p65
      %p67 = scmp.ne.s32.totalorder %s55, %s56
      %p68 = scmp.eq.s32.totalorder %s25, 1
      %p69 = por %p67, %p68
      %p71 = scmp.ne.s32.totalorder %s56, %s70
      %p72 = scmp.eq.s32.totalorder %s25, 0
      %p73 = por %p71, %p72
      %s75 = sadd.s32 %s74, 1
      %p78 = scmp.eq.s32.totalorder %s19, 1
      %p79 = scmp.ne.s32.totalorder %s74, %s76
      %p80 = scmp.eq.s32.totalorder %s19, 0
      %p81 = por %p79, %p80
      %p82 = scmp.ne.s32.totalorder %s74, %s76
      %p83 = scmp.eq.s32.totalorder %s24, 1
      %p84 = por %p82, %p83
      %p85 = scmp.ne.s32.totalorder %s76, %s77
      %p86 = scmp.eq.s32.totalorder %s24, 0
      %p87 = por %p85, %p86
      %p88 = scmp.ne.s32.totalorder %s76, %s77
      %p89 = scmp.eq.s32.totalorder %s25, 1
      %p90 = por %p88, %p89
      %p92 = scmp.ne.s32.totalorder %s77, %s91
      %p93 = scmp.eq.s32.totalorder %s25, 0
      %p94 = por %p92, %p93
      %s96 = sadd.s32 %s95, 1
      %p99 = scmp.eq.s32.totalorder %s19, 1
      %p100 = scmp.ne.s32.totalorder %s95, %s97
      %p101 = scmp.eq.s32.totalorder %s19, 0
      %p102 = por %p100, %p101
      %p103 = scmp.ne.s32.totalorder %s95, %s97
      %p104 = scmp.eq.s32.totalorder %s24, 1
      %p105 = por %p103, %p104
      %p106 = scmp.ne.s32.totalorder %s97, %s98
      %p107 = scmp.eq.s32.totalorder %s24, 0
      %p108 = por %p106, %p107
      %p109 = scmp.ne.s32.totalorder %s97, %s98
      %p110 = scmp.eq.s32.totalorder %s25, 1
      %p111 = por %p109, %p110
      %p113 = scmp.ne.s32.totalorder %s98, %s112
      %p114 = scmp.eq.s32.totalorder %s25, 0
      %p115 = por %p113, %p114
      %s117 = sadd.s32 %s116, 1
      %p120 = scmp.eq.s32.totalorder %s19, 1
      %p121 = scmp.ne.s32.totalorder %s116, %s118
      %p122 = scmp.eq.s32.totalorder %s19, 0
      %p123 = por %p121, %p122
      %p124 = scmp.ne.s32.totalorder %s116, %s118
      %p125 = scmp.eq.s32.totalorder %s24, 1
      %p126 = por %p124, %p125
      %p127 = scmp.ne.s32.totalorder %s118, %s119
      %p128 = scmp.eq.s32.totalorder %s24, 0
      %p129 = por %p127, %p128
      %p130 = scmp.ne.s32.totalorder %s118, %s119
      %p131 = scmp.eq.s32.totalorder %s25, 1
      %p132 = por %p130, %p131
      %p134 = scmp.ne.s32.totalorder %s119, %s133
      %p135 = scmp.eq.s32.totalorder %s25, 0
      %p136 = por %p134, %p135
      %s137 = ssub.s32 %s19, %s26
      %p138 = scmp.eq.s32.totalorder %s137, 0
      %s140 = sadd.s32 %s139, 1
      %s141 = scalar_select %p138, %s139, %s140
      %p144 = pneg %p138
      %p145 = scmp.eq.s32.totalorder %s19, 1
      %p146 = por %p144, %p145
      %p147 = scmp.ne.s32.totalorder %s139, %s142
      %p148 = scmp.eq.s32.totalorder %s19, 0
      %p149 = por %p147, %p148
      %p150 = scmp.ne.s32.totalorder %s139, %s142
      %p151 = scmp.eq.s32.totalorder %s24, 1
      %p152 = por %p150, %p151
      %p153 = scmp.ne.s32.totalorder %s142, %s143
      %p154 = scmp.eq.s32.totalorder %s24, 0
      %p155 = por %p153, %p154
      %p156 = scmp.ne.s32.totalorder %s142, %s143
      %p157 = scmp.eq.s32.totalorder %s25, 1
      %p158 = por %p156, %p157
      %p160 = scmp.ne.s32.totalorder %s143, %s159
      %p161 = scmp.eq.s32.totalorder %s25, 0
      %p162 = por %p160, %p161
      %p163 = scmp.le.s32.totalorder 1, %s19
      %p164 = scmp.lt.s32.totalorder %s19, 3
      %p165 = pnand %p163, %p164
      %p166 = pneg %p165
      // Predicated region
      $region9: #{transformer_encoder.1} parent=5 // pred_check
        _
      $region10: #{transformer_encoder.1} parent=5 // pred_check_branch
        %168 = sbr.rel (%p165) target = $region12
      $region11: #{transformer_encoder.1} parent=5 // pred_region
        %s169 = ssub.s32 %s19, 1
        // Predicated region
        $region13: #{transformer_encoder.1} parent=11 // pred_check
          %p170 = pneg %p66
        $region14: #{transformer_encoder.1} parent=11 // pred_check_branch
          %172 = sbr.rel (%p170) target = $region16
        $region15: #{transformer_encoder.1} parent=11 // pred_region
          %s174 = ssub.s32 256, 256
          %175 = vsyncadd [#allocation6], %s174
          %s176 = sshll.u32 [#allocation5], 4
          %s177 = int_to_ptr.vmem [resolvable:$true] %s176
          %182 = dma.hbm_to_vmem [thread:$0]  %s1, 256, %s177, [#allocation6], 128, 128, 8
        $region16: #{transformer_encoder.1} parent=11 // pred_fallthru
          _
        // Predicated region
        $region17: #{transformer_encoder.1} parent=11 // pred_check
          %p183 = pneg %p87
        $region18: #{transformer_encoder.1} parent=11 // pred_check_branch
          %185 = sbr.rel (%p183) target = $region20
        $region19: #{transformer_encoder.1} parent=11 // pred_region
          %s187 = ssub.s32 256, 256
          %188 = vsyncadd [#allocation6], %s187
          %s189 = sshll.u32 [#allocation7], 4
          %s190 = int_to_ptr.vmem [resolvable:$true] %s189
          %195 = dma.hbm_to_vmem [thread:$0]  %s2, 256, %s190, [#allocation6], 64, 64, 4
        $region20: #{transformer_encoder.1} parent=11 // pred_fallthru
          _
        // Predicated region
        $region21: #{transformer_encoder.1} parent=11 // pred_check
          %p196 = pneg %p108
        $region22: #{transformer_encoder.1} parent=11 // pred_check_branch
          %198 = sbr.rel (%p196) target = $region24
        $region23: #{transformer_encoder.1} parent=11 // pred_region
          %s200 = ssub.s32 256, 256
          %201 = vsyncadd [#allocation9], %s200
          %s202 = sshll.u32 [#allocation8], 4
          %s203 = int_to_ptr.vmem [resolvable:$true] %s202
          %208 = dma.hbm_to_vmem [thread:$0]  %s3, 256, %s203, [#allocation9], 64, 64, 4
        $region24: #{transformer_encoder.1} parent=11 // pred_fallthru
          _
        // Predicated region
        $region25: #{transformer_encoder.1} parent=11 // pred_check
          %p209 = pneg %p129
        $region26: #{transformer_encoder.1} parent=11 // pred_check_branch
          %211 = sbr.rel (%p209) target = $region28
        $region27: #{transformer_encoder.1} parent=11 // pred_region
          _
        $region28: #{transformer_encoder.1} parent=11 // pred_fallthru
          _
      $region12: #{transformer_encoder.1} parent=5 // pred_fallthru
        _
      %p212 = scmp.lt.s32.totalorder %s19, 2
      // Predicated region
      $region29: #{transformer_encoder.1} parent=5 // pred_check
        %p213 = pneg %p212
      $region30: #{transformer_encoder.1} parent=5 // pred_check_branch
        %215 = sbr.rel (%p213) target = $region32
      $region31: #{transformer_encoder.1} parent=5 // pred_region
        // Predicated region
        $region33: #{transformer_encoder.1} parent=31 // pred_check
          %p216 = pneg %p39
        $region34: #{transformer_encoder.1} parent=31 // pred_check_branch
          %218 = sbr.rel (%p216) target = $region36
        $region35: #{transformer_encoder.1} parent=31 // pred_region
          %s219 = sand.u32 %s29, 1
          %s220 = scalar_lea.sflag [#allocation3], %s219
          %s221 = sand.u32 %s29, 1
          %s222 = smul.addr %s221, 8
          %s223 = scalar_lea.vmem [#allocation2], %s222
          %s225 = ssub.s32 128, 128
          %226 = vsyncadd %s220, %s225
          %s227 = smul.addr %s19, 128
          %s228 = scalar_lea.hbm %s0, %s227
          %s230 = sshll.u32 %s223, 4
          %s231 = int_to_ptr.vmem [resolvable:$true] %s230
          %233 = dma.hbm_to_vmem [thread:$0]  %s228, 128, %s231, %s220
        $region36: #{transformer_encoder.1} parent=31 // pred_fallthru
          _
      $region32: #{transformer_encoder.1} parent=5 // pred_fallthru
        _
      %p234 = scmp.le.s32.totalorder 1, %s19
      %p235 = scmp.lt.s32.totalorder %s19, 3
      %p236 = pnand %p234, %p235
      %p237 = pneg %p236
      // Predicated region
      $region37: #{transformer_encoder.1} parent=5 // pred_check
        _
      $region38: #{transformer_encoder.1} parent=5 // pred_check_branch
        %239 = sbr.rel (%p236) target = $region40
      $region39: #{transformer_encoder.1} parent=5 // pred_region
        %s240 = ssub.s32 %s19, 1
        %s241 = sand.u32 %s32, 1
        %s242 = scalar_lea.sflag [#allocation3], %s241
        %s243 = sand.u32 %s32, 1
        %s244 = smul.addr %s243, 8
        %s245 = scalar_lea.vmem [#allocation2], %s244
        // Predicated region
        $region41: #{transformer_encoder.1} parent=39 // pred_check
          %p246 = pneg %p45
        $region42: #{transformer_encoder.1} parent=39 // pred_check_branch
          %248 = sbr.rel (%p246) target = $region44
        $region43: #{transformer_encoder.1} parent=39 // pred_region
          %249 = dma.done %s242, 128
        $region44: #{transformer_encoder.1} parent=39 // pred_fallthru
          _
        // Predicated region
        $region45: #{transformer_encoder.1} parent=39 // pred_check
          %p250 = pneg %p66
        $region46: #{transformer_encoder.1} parent=39 // pred_check_branch
          %252 = sbr.rel (%p250) target = $region48
        $region47: #{transformer_encoder.1} parent=39 // pred_region
          %253 = dma.done [#allocation6], 256
        $region48: #{transformer_encoder.1} parent=39 // pred_fallthru
          _
        // Predicated region
        $region49: #{transformer_encoder.1} parent=39 // pred_check
          %p254 = pneg %p87
        $region50: #{transformer_encoder.1} parent=39 // pred_check_branch
          %256 = sbr.rel (%p254) target = $region52
        $region51: #{transformer_encoder.1} parent=39 // pred_region
          %257 = dma.done [#allocation6], 256
        $region52: #{transformer_encoder.1} parent=39 // pred_fallthru
          _
        // Predicated region
        $region53: #{transformer_encoder.1} parent=39 // pred_check
          %p258 = pneg %p108
        $region54: #{transformer_encoder.1} parent=39 // pred_check_branch
          %260 = sbr.rel (%p258) target = $region56
        $region55: #{transformer_encoder.1} parent=39 // pred_region
          %261 = dma.done [#allocation9], 256
        $region56: #{transformer_encoder.1} parent=39 // pred_fallthru
          _
        %s262 = sand.u32 %s32, 1
        %s263 = scalar_lea.sflag [#allocation3], %s262
        %s264 = sand.u32 %s32, 1
        %s265 = smul.addr %s264, 8
        %s266 = scalar_lea.vmem [#allocation2], %s265
        %p267 = pneg %p45
        %p268 = pneg %p42
        %p269 = pneg %p66
        %p270 = pneg %p63
        %p271 = pneg %p87
        %p272 = pneg %p84
        %p273 = pneg %p108
        %p274 = pneg %p105
        %p275 = pneg %p129
        %p276 = pneg %p126
        %p277 = pneg %p155
        %p278 = pneg %p152
        %s279 = sand.u32 %s142, 1
        %s280 = scalar_lea.sflag [#allocation4], %s279
        %s281 = sand.u32 %s142, 1
        %s282 = smul.addr %s281, 8
        %s283 = scalar_lea.vmem [#allocation10], %s282
        %v285 = vld [vmem:[%s245] sm:$0xff]
        %v286 = vld [vmem:[#allocation5] sm:$0x1]
        %v287 = vld [vmem:[#allocation5 + $0x1] sm:$0x1]
        %v288 = vld [vmem:[#allocation5 + $0x2] sm:$0x1]
        %v289 = vld [vmem:[#allocation5 + $0x3] sm:$0x1]
        %v290 = vld [vmem:[#allocation5 + $0x4] sm:$0x1]
        %v291 = vld [vmem:[#allocation5 + $0x5] sm:$0x1]
        %v292 = vld [vmem:[#allocation5 + $0x6] sm:$0x1]
        %v293 = vld [vmem:[#allocation5 + $0x7] sm:$0x1]
        %v294 = vld [vmem:[#allocation5 + $0x8] sm:$0x1]
        %vm295 = vcmask 261120
        %v296 = vsel %vm295, %v285, 0.0
        %297 = vadd.xlane.f32.xlu0 %v296
        %v298 = vpop.xlane.xlu0 %297
        %v299 = vrcp.pop 32.0
        %v300 = vmul.f32 %v298, %v299
        %v301 = vsub.f32 %v285, %v300
        %v302 = vmul.f32 %v301, %v301
        %v303 = vsel %vm295, %v302, 0.0
        %304 = vadd.xlane.f32.xlu0 %v303
        %v305 = vpop.xlane.xlu0 %304
        %v306 = vmul.f32 %v305, %v299
        %v307 = vadd.f32 %v306, 1e-05
        %v308 = vrsqrt.pop %v307
        %v309 = vmul.f32 %v301, %v308
        %v310 = vlaneseq
        %v311 = vshrl.u32 %v310, 7
        %v312 = vsub.s32 0, %v311
        %v313 = vrot.slane %v286, %v312
        %v314 = vmul.f32 %v309, %v313
        %v315 = vlaneseq
        %v316 = vshrl.u32 %v315, 7
        %v317 = vsub.s32 0, %v316
        %v318 = vrot.slane %v287, %v317
        %v319 = vadd.f32 %v314, %v318
        %v320 = vpack.c.bf16 %v319, %v319
        %v321 = vld [vmem:[#allocation7] sm:$0xf]
        %v322 = vld [vmem:[#allocation7 + $0x4] sm:$0xf]
        %v323 = vld [vmem:[#allocation7 + $0x8] sm:$0xf]
        %v324 = vld [vmem:[#allocation7 + $0xc] sm:$0xf]
        %v325 = vlaneseq
        %v326 = vshrl.u32 %v325, 7
        %v327 = vsub.s32 0, %v326
        %v328 = vrot.slane %v288, %v327
        %v333 = vunpack.c.l.b16 %v321
        %v334 = vunpack.c.l.b16 %v322
        %v335 = vunpack.c.l.b16 %v323
        %v336 = vunpack.c.l.b16 %v324
        %v337 = vpack.c.b16 %v334, %v333
        %v338 = vpack.c.b16 %v336, %v335
        %v342 = vsel %vm295, %v320, 0
        %344 = vmatprep.subr.bf16.mxu0 0
        %345 = vmatpush1.bf16.msra.mxu0 %v337
        %346 = vmatprep.subr.bf16.mxu0 0
        %347 = vmatpush1.bf16.msra.mxu0 %v338
        %348 = vmatprep.subr.bf16.mxu0 0
        %349 = vmatpush1.bf16.msra.mxu0 0
        %350 = vmatprep.subr.bf16.mxu0 0
        %351 = vmatpush1.bf16.msra.mxu0 0
        %352 = vmatprep.subr.bf16.mxu0 0
        %353 = vmatpush1.bf16.msra.mxu0 0
        %354 = vmatprep.subr.bf16.mxu0 0
        %355 = vmatpush1.bf16.msra.mxu0 0
        %356 = vmatprep.subr.bf16.mxu0 0
        %357 = vmatpush1.bf16.msra.mxu0 0
        %358 = vmatprep.subr.bf16.mxu0 0
        %359 = vmatpush1.bf16.msra.mxu0 0
        %360 = vmatprep.subr.bf16.mxu0 0
        %361 = vmatpush1.bf16.msra.mxu0 0
        %362 = vmatprep.subr.bf16.mxu0 0
        %363 = vmatpush1.bf16.msra.mxu0 0
        %364 = vmatprep.subr.bf16.mxu0 0
        %365 = vmatpush1.bf16.msra.mxu0 0
        %366 = vmatprep.subr.bf16.mxu0 0
        %367 = vmatpush1.bf16.msra.mxu0 0
        %368 = vmatprep.subr.bf16.mxu0 0
        %369 = vmatpush1.bf16.msra.mxu0 0
        %370 = vmatprep.subr.bf16.mxu0 0
        %371 = vmatpush1.bf16.msra.mxu0 0
        %372 = vmatprep.subr.bf16.mxu0 0
        %373 = vmatpush1.bf16.msra.mxu0 0
        %374 = vmatprep.subr.bf16.mxu0 0
        %375 = vmatpush1.bf16.msra.mxu0 0
        %376 = vmatprep.mubr.bf16.mxu0 0
        %377 = vmatmul.mubr.bf16.gmra.mrb[0].mxu0 %v342
        %v378 = vpop.f32.mrb[0].mxu0
        %v379 = vadd.f32 %v328, %v378
        %v380 = vpop.f32.mrb[0].mxu0
        %v381 = vpop.f32.mrb[0].mxu0
        %v382 = vpop.f32.mrb[0].mxu0
        %383 = vdwg.mxu0
        %v384 = vmax.f32 %v379, 0.0
        %v385 = vpack.c.bf16 %v384, %v384
        %v386 = vld [vmem:[#allocation8] sm:$0xf]
        %v387 = vld [vmem:[#allocation8 + $0x4] sm:$0xf]
        %v388 = vld [vmem:[#allocation8 + $0x8] sm:$0xf]
        %v389 = vld [vmem:[#allocation8 + $0xc] sm:$0xf]
        %v394 = vunpack.c.l.b16 %v386
        %v395 = vunpack.c.l.b16 %v387
        %v396 = vunpack.c.l.b16 %v388
        %v397 = vunpack.c.l.b16 %v389
        %v398 = vpack.c.b16 %v395, %v394
        %v399 = vpack.c.b16 %v397, %v396
        %v403 = vsel %vm295, %v385, 0
        %405 = vmatprep.subr.bf16.mxu0 0
        %406 = vmatpush1.bf16.msra.mxu0 %v398
        %407 = vmatprep.subr.bf16.mxu0 0
        %408 = vmatpush1.bf16.msra.mxu0 %v399
        %409 = vmatprep.subr.bf16.mxu0 0
        %410 = vmatpush1.bf16.msra.mxu0 0
        %411 = vmatprep.subr.bf16.mxu0 0
        %412 = vmatpush1.bf16.msra.mxu0 0
        %413 = vmatprep.subr.bf16.mxu0 0
        %414 = vmatpush1.bf16.msra.mxu0 0
        %415 = vmatprep.subr.bf16.mxu0 0
        %416 = vmatpush1.bf16.msra.mxu0 0
        %417 = vmatprep.subr.bf16.mxu0 0
        %418 = vmatpush1.bf16.msra.mxu0 0
        %419 = vmatprep.subr.bf16.mxu0 0
        %420 = vmatpush1.bf16.msra.mxu0 0
        %421 = vmatprep.subr.bf16.mxu0 0
        %422 = vmatpush1.bf16.msra.mxu0 0
        %423 = vmatprep.subr.bf16.mxu0 0
        %424 = vmatpush1.bf16.msra.mxu0 0
        %425 = vmatprep.subr.bf16.mxu0 0
        %426 = vmatpush1.bf16.msra.mxu0 0
        %427 = vmatprep.subr.bf16.mxu0 0
        %428 = vmatpush1.bf16.msra.mxu0 0
        %429 = vmatprep.subr.bf16.mxu0 0
        %430 = vmatpush1.bf16.msra.mxu0 0
        %431 = vmatprep.subr.bf16.mxu0 0
        %432 = vmatpush1.bf16.msra.mxu0 0
        %433 = vmatprep.subr.bf16.mxu0 0
        %434 = vmatpush1.bf16.msra.mxu0 0
        %435 = vmatprep.subr.bf16.mxu0 0
        %436 = vmatpush1.bf16.msra.mxu0 0
        %437 = vmatprep.mubr.bf16.mxu0 0
        %438 = vmatmul.mubr.bf16.gmra.mrb[0].mxu0 %v403
        %v439 = vpop.f32.mrb[0].mxu0
        %v440 = vadd.f32 0.0, %v439
        %v441 = vpop.f32.mrb[0].mxu0
        %v442 = vpop.f32.mrb[0].mxu0
        %v443 = vpop.f32.mrb[0].mxu0
        %444 = vdwg.mxu0
        %v445 = vlaneseq
        %v446 = vshrl.u32 %v445, 7
        %v447 = vsub.s32 0, %v446
        %v448 = vrot.slane %v289, %v447
        %v449 = vadd.f32 %v440, %v448
        %v450 = vpack.c.bf16 %v449, %v449
        %v451 = vlaneseq
        %v452 = vshrl.u32 %v451, 7
        %v453 = vsub.s32 0, %v452
        %v454 = vrot.slane %v290, %v453
        %456 = vrot.lane.b32.xlu0 %v454, 32
        %v457 = vpop.permute.xlu0 %456
        %v459 = vadd.f32 %v440, %v457
        %v460 = vpack.c.bf16 %v459, %v459
        %v461 = vlaneseq
        %v462 = vshrl.u32 %v461, 7
        %v463 = vsub.s32 0, %v462
        %v464 = vrot.slane %v291, %v463
        %466 = vrot.lane.b32.xlu0 %v464, 64
        %v467 = vpop.permute.xlu0 %466
        %v469 = vadd.f32 %v440, %v467
        %v470 = vpack.c.bf16 %v469, %v469
        %472 = vrot.lane.b32.xlu0 %v460, 96
        %v473 = vpop.permute.xlu0 %472
        %vm474 = vcmask 64512
        %v476 = vsel %vm474, %v450, 0
        %v479 = vsel %vm474, %v473, 0
        %481 = vmatprep.subr.bf16.mxu0 0
        %482 = vmatpush1.bf16.xpose.msra.mxu0 %v479
        %483 = vmatprep.subr.bf16.mxu0 0
        %484 = vmatpush1.bf16.xpose.msra.mxu0 0
        %485 = vmatprep.subr.bf16.mxu0 0
        %486 = vmatpush1.bf16.xpose.msra.mxu0 0
        %487 = vmatprep.subr.bf16.mxu0 0
        %488 = vmatpush1.bf16.xpose.msra.mxu0 0
        %489 = vmatprep.subr.bf16.mxu0 0
        %490 = vmatpush1.bf16.xpose.msra.mxu0 0
        %491 = vmatprep.subr.bf16.mxu0 0
        %492 = vmatpush1.bf16.xpose.msra.mxu0 0
        %493 = vmatprep.subr.bf16.mxu0 0
        %494 = vmatpush1.bf16.xpose.msra.mxu0 0
        %495 = vmatprep.subr.bf16.mxu0 0
        %496 = vmatpush1.bf16.xpose.msra.mxu0 0
        %497 = vmatprep.subr.bf16.mxu0 0
        %498 = vmatpush1.bf16.xpose.msra.mxu0 0
        %499 = vmatprep.subr.bf16.mxu0 0
        %500 = vmatpush1.bf16.xpose.msra.mxu0 0
        %501 = vmatprep.subr.bf16.mxu0 0
        %502 = vmatpush1.bf16.xpose.msra.mxu0 0
        %503 = vmatprep.subr.bf16.mxu0 0
        %504 = vmatpush1.bf16.xpose.msra.mxu0 0
        %505 = vmatprep.subr.bf16.mxu0 0
        %506 = vmatpush1.bf16.xpose.msra.mxu0 0
        %507 = vmatprep.subr.bf16.mxu0 0
        %508 = vmatpush1.bf16.xpose.msra.mxu0 0
        %509 = vmatprep.subr.bf16.mxu0 0
        %510 = vmatpush1.bf16.xpose.msra.mxu0 0
        %511 = vmatprep.subr.bf16.mxu0 0
        %512 = vmatpush1.bf16.xpose.msra.mxu0 0
        %513 = vmatprep.mubr.bf16.mxu0 0
        %514 = vmatmul.mubr.bf16.gmra.mrb[0].mxu0 %v476
        %v515 = vpop.f32.mrb[0].mxu0
        %v516 = vadd.f32 0.0, %v515
        %v517 = vpop.f32.mrb[0].mxu0
        %v518 = vpop.f32.mrb[0].mxu0
        %v519 = vpop.f32.mrb[0].mxu0
        %520 = vdwg.mxu0
        %v521 = vsel %vm474, %v516, -inf
        %522 = vmax.xlane.f32.xlu0 %v521
        %v523 = vpop.xlane.xlu0 %522
        %v524 = vsub.f32 %v516, %v523
        %v525 = vmul.f32 %v524, 1.442695
        %v526 = vpow.pop %v525
        %v527 = vsel %vm474, %v526, 0.0
        %528 = vadd.xlane.f32.xlu0 %v527
        %v529 = vpop.xlane.xlu0 %528
        %v530 = vrcp.pop %v529
        %v531 = vmul.f32 %v526, %v530
        %v532 = vpack.c.bf16 %v531, %v531
        %534 = vrot.lane.b32.xlu0 %v470, 64
        %v535 = vpop.permute.xlu0 %534
        %v537 = vsel %vm474, %v532, 0
        %vm539 = vcmask 1043456
        %v541 = vsel %vm539, %v535, 0
        %543 = vmatprep.subr.bf16.mxu0 0
        %544 = vmatpush1.bf16.msra.mxu0 %v541
        %545 = vmatprep.subr.bf16.mxu0 0
        %546 = vmatpush1.bf16.msra.mxu0 0
        %547 = vmatprep.subr.bf16.mxu0 0
        %548 = vmatpush1.bf16.msra.mxu0 0
        %549 = vmatprep.subr.bf16.mxu0 0
        %550 = vmatpush1.bf16.msra.mxu0 0
        %551 = vmatprep.subr.bf16.mxu0 0
        %552 = vmatpush1.bf16.msra.mxu0 0
        %553 = vmatprep.subr.bf16.mxu0 0
        %554 = vmatpush1.bf16.msra.mxu0 0
        %555 = vmatprep.subr.bf16.mxu0 0
        %556 = vmatpush1.bf16.msra.mxu0 0
        %557 = vmatprep.subr.bf16.mxu0 0
        %558 = vmatpush1.bf16.msra.mxu0 0
        %559 = vmatprep.subr.bf16.mxu0 0
        %560 = vmatpush1.bf16.msra.mxu0 0
        %561 = vmatprep.subr.bf16.mxu0 0
        %562 = vmatpush1.bf16.msra.mxu0 0
        %563 = vmatprep.subr.bf16.mxu0 0
        %564 = vmatpush1.bf16.msra.mxu0 0
        %565 = vmatprep.subr.bf16.mxu0 0
        %566 = vmatpush1.bf16.msra.mxu0 0
        %567 = vmatprep.subr.bf16.mxu0 0
        %568 = vmatpush1.bf16.msra.mxu0 0
        %569 = vmatprep.subr.bf16.mxu0 0
        %570 = vmatpush1.bf16.msra.mxu0 0
        %571 = vmatprep.subr.bf16.mxu0 0
        %572 = vmatpush1.bf16.msra.mxu0 0
        %573 = vmatprep.subr.bf16.mxu0 0
        %574 = vmatpush1.bf16.msra.mxu0 0
        %575 = vmatprep.mubr.bf16.mxu0 0
        %576 = vmatmul.mubr.bf16.gmra.mrb[0].mxu0 %v537
        %v577 = vpop.f32.mrb[0].mxu0
        %v578 = vadd.f32 0.0, %v577
        %v579 = vpop.f32.mrb[0].mxu0
        %v580 = vpop.f32.mrb[0].mxu0
        %v581 = vpop.f32.mrb[0].mxu0
        %582 = vdwg.mxu0
        %584 = vrot.lane.b32.xlu0 %v450, 120
        %v585 = vpop.permute.xlu0 %584
        %586 = vrot.lane.b32.xlu0 %v460, 88
        %v587 = vpop.permute.xlu0 %586
        %v589 = vsel %vm474, %v585, 0
        %v592 = vsel %vm474, %v587, 0
        %594 = vmatprep.subr.bf16.mxu0 0
        %595 = vmatpush1.bf16.xpose.msra.mxu0 %v592
        %596 = vmatprep.subr.bf16.mxu0 0
        %597 = vmatpush1.bf16.xpose.msra.mxu0 0
        %598 = vmatprep.subr.bf16.mxu0 0
        %599 = vmatpush1.bf16.xpose.msra.mxu0 0
        %600 = vmatprep.subr.bf16.mxu0 0
        %601 = vmatpush1.bf16.xpose.msra.mxu0 0
        %602 = vmatprep.subr.bf16.mxu0 0
        %603 = vmatpush1.bf16.xpose.msra.mxu0 0
        %604 = vmatprep.subr.bf16.mxu0 0
        %605 = vmatpush1.bf16.xpose.msra.mxu0 0
        %606 = vmatprep.subr.bf16.mxu0 0
        %607 = vmatpush1.bf16.xpose.msra.mxu0 0
        %608 = vmatprep.subr.bf16.mxu0 0
        %609 = vmatpush1.bf16.xpose.msra.mxu0 0
        %610 = vmatprep.subr.bf16.mxu0 0
        %611 = vmatpush1.bf16.xpose.msra.mxu0 0
        %612 = vmatprep.subr.bf16.mxu0 0
        %613 = vmatpush1.bf16.xpose.msra.mxu0 0
        %614 = vmatprep.subr.bf16.mxu0 0
        %615 = vmatpush1.bf16.xpose.msra.mxu0 0
        %616 = vmatprep.subr.bf16.mxu0 0
        %617 = vmatpush1.bf16.xpose.msra.mxu0 0
        %618 = vmatprep.subr.bf16.mxu0 0
        %619 = vmatpush1.bf16.xpose.msra.mxu0 0
        %620 = vmatprep.subr.bf16.mxu0 0
        %621 = vmatpush1.bf16.xpose.msra.mxu0 0
        %622 = vmatprep.subr.bf16.mxu0 0
        %623 = vmatpush1.bf16.xpose.msra.mxu0 0
        %624 = vmatprep.subr.bf16.mxu0 0
        %625 = vmatpush1.bf16.xpose.msra.mxu0 0
        %626 = vmatprep.mubr.bf16.mxu0 0
        %627 = vmatmul.mubr.bf16.gmra.mrb[0].mxu0 %v589
        %v628 = vpop.f32.mrb[0].mxu0
        %v629 = vadd.f32 0.0, %v628
        %v630 = vpop.f32.mrb[0].mxu0
        %v631 = vpop.f32.mrb[0].mxu0
        %v632 = vpop.f32.mrb[0].mxu0
        %633 = vdwg.mxu0
        %v634 = vsel %vm474, %v629, -inf
        %635 = vmax.xlane.f32.xlu0 %v634
        %v636 = vpop.xlane.xlu0 %635
        %v637 = vsub.f32 %v629, %v636
        %v638 = vmul.f32 %v637, 1.442695
        %v639 = vpow.pop %v638
        %v640 = vsel %vm474, %v639, 0.0
        %641 = vadd.xlane.f32.xlu0 %v640
        %v642 = vpop.xlane.xlu0 %641
        %v643 = vrcp.pop %v642
        %v644 = vmul.f32 %v639, %v643
        %v645 = vpack.c.bf16 %v644, %v644
        %646 = vrot.lane.b32.xlu0 %v470, 56
        %v647 = vpop.permute.xlu0 %646
        %v649 = vsel %vm474, %v645, 0
        %v652 = vsel %vm539, %v647, 0
        %654 = vmatprep.subr.bf16.mxu0 0
        %655 = vmatpush1.bf16.msra.mxu0 %v652
        %656 = vmatprep.subr.bf16.mxu0 0
        %657 = vmatpush1.bf16.msra.mxu0 0
        %658 = vmatprep.subr.bf16.mxu0 0
        %659 = vmatpush1.bf16.msra.mxu0 0
        %660 = vmatprep.subr.bf16.mxu0 0
        %661 = vmatpush1.bf16.msra.mxu0 0
        %662 = vmatprep.subr.bf16.mxu0 0
        %663 = vmatpush1.bf16.msra.mxu0 0
        %664 = vmatprep.subr.bf16.mxu0 0
        %665 = vmatpush1.bf16.msra.mxu0 0
        %666 = vmatprep.subr.bf16.mxu0 0
        %667 = vmatpush1.bf16.msra.mxu0 0
        %668 = vmatprep.subr.bf16.mxu0 0
        %669 = vmatpush1.bf16.msra.mxu0 0
        %670 = vmatprep.subr.bf16.mxu0 0
        %671 = vmatpush1.bf16.msra.mxu0 0
        %672 = vmatprep.subr.bf16.mxu0 0
        %673 = vmatpush1.bf16.msra.mxu0 0
        %674 = vmatprep.subr.bf16.mxu0 0
        %675 = vmatpush1.bf16.msra.mxu0 0
        %676 = vmatprep.subr.bf16.mxu0 0
        %677 = vmatpush1.bf16.msra.mxu0 0
        %678 = vmatprep.subr.bf16.mxu0 0
        %679 = vmatpush1.bf16.msra.mxu0 0
        %680 = vmatprep.subr.bf16.mxu0 0
        %681 = vmatpush1.bf16.msra.mxu0 0
        %682 = vmatprep.subr.bf16.mxu0 0
        %683 = vmatpush1.bf16.msra.mxu0 0
        %684 = vmatprep.subr.bf16.mxu0 0
        %685 = vmatpush1.bf16.msra.mxu0 0
        %686 = vmatprep.mubr.bf16.mxu0 0
        %687 = vmatmul.mubr.bf16.gmra.mrb[0].mxu0 %v649
        %v688 = vpop.f32.mrb[0].mxu0
        %v689 = vadd.f32 0.0, %v688
        %v690 = vpop.f32.mrb[0].mxu0
        %v691 = vpop.f32.mrb[0].mxu0
        %v692 = vpop.f32.mrb[0].mxu0
        %693 = vdwg.mxu0
        %694 = vrot.lane.b32.xlu0 %v450, 112
        %v695 = vpop.permute.xlu0 %694
        %696 = vrot.lane.b32.xlu0 %v460, 80
        %v697 = vpop.permute.xlu0 %696
        %v699 = vsel %vm474, %v695, 0
        %v702 = vsel %vm474, %v697, 0
        %704 = vmatprep.subr.bf16.mxu0 0
        %705 = vmatpush1.bf16.xpose.msra.mxu0 %v702
        %706 = vmatprep.subr.bf16.mxu0 0
        %707 = vmatpush1.bf16.xpose.msra.mxu0 0
        %708 = vmatprep.subr.bf16.mxu0 0
        %709 = vmatpush1.bf16.xpose.msra.mxu0 0
        %710 = vmatprep.subr.bf16.mxu0 0
        %711 = vmatpush1.bf16.xpose.msra.mxu0 0
        %712 = vmatprep.subr.bf16.mxu0 0
        %713 = vmatpush1.bf16.xpose.msra.mxu0 0
        %714 = vmatprep.subr.bf16.mxu0 0
        %715 = vmatpush1.bf16.xpose.msra.mxu0 0
        %716 = vmatprep.subr.bf16.mxu0 0
        %717 = vmatpush1.bf16.xpose.msra.mxu0 0
        %718 = vmatprep.subr.bf16.mxu0 0
        %719 = vmatpush1.bf16.xpose.msra.mxu0 0
        %720 = vmatprep.subr.bf16.mxu0 0
        %721 = vmatpush1.bf16.xpose.msra.mxu0 0
        %722 = vmatprep.subr.bf16.mxu0 0
        %723 = vmatpush1.bf16.xpose.msra.mxu0 0
        %724 = vmatprep.subr.bf16.mxu0 0
        %725 = vmatpush1.bf16.xpose.msra.mxu0 0
        %726 = vmatprep.subr.bf16.mxu0 0
        %727 = vmatpush1.bf16.xpose.msra.mxu0 0
        %728 = vmatprep.subr.bf16.mxu0 0
        %729 = vmatpush1.bf16.xpose.msra.mxu0 0
        %730 = vmatprep.subr.bf16.mxu0 0
        %731 = vmatpush1.bf16.xpose.msra.mxu0 0
        %732 = vmatprep.subr.bf16.mxu0 0
        %733 = vmatpush1.bf16.xpose.msra.mxu0 0
        %734 = vmatprep.subr.bf16.mxu0 0
        %735 = vmatpush1.bf16.xpose.msra.mxu0 0
        %736 = vmatprep.mubr.bf16.mxu0 0
        %737 = vmatmul.mubr.bf16.gmra.mrb[0].mxu0 %v699
        %v738 = vpop.f32.mrb[0].mxu0
        %v739 = vadd.f32 0.0, %v738
        %v740 = vpop.f32.mrb[0].mxu0
        %v741 = vpop.f32.mrb[0].mxu0
        %v742 = vpop.f32.mrb[0].mxu0
        %743 = vdwg.mxu0
        %v744 = vsel %vm474, %v739, -inf
        %745 = vmax.xlane.f32.xlu0 %v744
        %v746 = vpop.xlane.xlu0 %745
        %v747 = vsub.f32 %v739, %v746
        %v748 = vmul.f32 %v747, 1.442695
        %v749 = vpow.pop %v748
        %v750 = vsel %vm474, %v749, 0.0
        %751 = vadd.xlane.f32.xlu0 %v750
        %v752 = vpop.xlane.xlu0 %751
        %v753 = vrcp.pop %v752
        %v754 = vmul.f32 %v749, %v753
        %v755 = vpack.c.bf16 %v754, %v754
        %756 = vrot.lane.b32.xlu0 %v470, 48
        %v757 = vpop.permute.xlu0 %756
        %v759 = vsel %vm474, %v755, 0
        %v762 = vsel %vm539, %v757, 0
        %764 = vmatprep.subr.bf16.mxu0 0
        %765 = vmatpush1.bf16.msra.mxu0 %v762
        %766 = vmatprep.subr.bf16.mxu0 0
        %767 = vmatpush1.bf16.msra.mxu0 0
        %768 = vmatprep.subr.bf16.mxu0 0
        %769 = vmatpush1.bf16.msra.mxu0 0
        %770 = vmatprep.subr.bf16.mxu0 0
        %771 = vmatpush1.bf16.msra.mxu0 0
        %772 = vmatprep.subr.bf16.mxu0 0
        %773 = vmatpush1.bf16.msra.mxu0 0
        %774 = vmatprep.subr.bf16.mxu0 0
        %775 = vmatpush1.bf16.msra.mxu0 0
        %776 = vmatprep.subr.bf16.mxu0 0
        %777 = vmatpush1.bf16.msra.mxu0 0
        %778 = vmatprep.subr.bf16.mxu0 0
        %779 = vmatpush1.bf16.msra.mxu0 0
        %780 = vmatprep.subr.bf16.mxu0 0
        %781 = vmatpush1.bf16.msra.mxu0 0
        %782 = vmatprep.subr.bf16.mxu0 0
        %783 = vmatpush1.bf16.msra.mxu0 0
        %784 = vmatprep.subr.bf16.mxu0 0
        %785 = vmatpush1.bf16.msra.mxu0 0
        %786 = vmatprep.subr.bf16.mxu0 0
        %787 = vmatpush1.bf16.msra.mxu0 0
        %788 = vmatprep.subr.bf16.mxu0 0
        %789 = vmatpush1.bf16.msra.mxu0 0
        %790 = vmatprep.subr.bf16.mxu0 0
        %791 = vmatpush1.bf16.msra.mxu0 0
        %792 = vmatprep.subr.bf16.mxu0 0
        %793 = vmatpush1.bf16.msra.mxu0 0
        %794 = vmatprep.subr.bf16.mxu0 0
        %795 = vmatpush1.bf16.msra.mxu0 0
        %796 = vmatprep.mubr.bf16.mxu0 0
        %797 = vmatmul.mubr.bf16.gmra.mrb[0].mxu0 %v759
        %v798 = vpop.f32.mrb[0].mxu0
        %v799 = vadd.f32 0.0, %v798
        %v800 = vpop.f32.mrb[0].mxu0
        %v801 = vpop.f32.mrb[0].mxu0
        %v802 = vpop.f32.mrb[0].mxu0
        %803 = vdwg.mxu0
        %804 = vrot.lane.b32.xlu0 %v450, 104
        %v805 = vpop.permute.xlu0 %804
        %806 = vrot.lane.b32.xlu0 %v460, 72
        %v807 = vpop.permute.xlu0 %806
        %v809 = vsel %vm474, %v805, 0
        %v812 = vsel %vm474, %v807, 0
        %814 = vmatprep.subr.bf16.mxu0 0
        %815 = vmatpush1.bf16.xpose.msra.mxu0 %v812
        %816 = vmatprep.subr.bf16.mxu0 0
        %817 = vmatpush1.bf16.xpose.msra.mxu0 0
        %818 = vmatprep.subr.bf16.mxu0 0
        %819 = vmatpush1.bf16.xpose.msra.mxu0 0
        %820 = vmatprep.subr.bf16.mxu0 0
        %821 = vmatpush1.bf16.xpose.msra.mxu0 0
        %822 = vmatprep.subr.bf16.mxu0 0
        %823 = vmatpush1.bf16.xpose.msra.mxu0 0
        %824 = vmatprep.subr.bf16.mxu0 0
        %825 = vmatpush1.bf16.xpose.msra.mxu0 0
        %826 = vmatprep.subr.bf16.mxu0 0
        %827 = vmatpush1.bf16.xpose.msra.mxu0 0
        %828 = vmatprep.subr.bf16.mxu0 0
        %829 = vmatpush1.bf16.xpose.msra.mxu0 0
        %830 = vmatprep.subr.bf16.mxu0 0
        %831 = vmatpush1.bf16.xpose.msra.mxu0 0
        %832 = vmatprep.subr.bf16.mxu0 0
        %833 = vmatpush1.bf16.xpose.msra.mxu0 0
        %834 = vmatprep.subr.bf16.mxu0 0
        %835 = vmatpush1.bf16.xpose.msra.mxu0 0
        %836 = vmatprep.subr.bf16.mxu0 0
        %837 = vmatpush1.bf16.xpose.msra.mxu0 0
        %838 = vmatprep.subr.bf16.mxu0 0
        %839 = vmatpush1.bf16.xpose.msra.mxu0 0
        %840 = vmatprep.subr.bf16.mxu0 0
        %841 = vmatpush1.bf16.xpose.msra.mxu0 0
        %842 = vmatprep.subr.bf16.mxu0 0
        %843 = vmatpush1.bf16.xpose.msra.mxu0 0
        %844 = vmatprep.subr.bf16.mxu0 0
        %845 = vmatpush1.bf16.xpose.msra.mxu0 0
        %846 = vmatprep.mubr.bf16.mxu0 0
        %847 = vmatmul.mubr.bf16.gmra.mrb[0].mxu0 %v809
        %v848 = vpop.f32.mrb[0].mxu0
        %v849 = vadd.f32 0.0, %v848
        %v850 = vpop.f32.mrb[0].mxu0
        %v851 = vpop.f32.mrb[0].mxu0
        %v852 = vpop.f32.mrb[0].mxu0
        %853 = vdwg.mxu0
        %v854 = vsel %vm474, %v849, -inf
        %855 = vmax.xlane.f32.xlu0 %v854
        %v856 = vpop.xlane.xlu0 %855
        %v857 = vsub.f32 %v849, %v856
        %v858 = vmul.f32 %v857, 1.442695
        %v859 = vpow.pop %v858
        %v860 = vsel %vm474, %v859, 0.0
        %861 = vadd.xlane.f32.xlu0 %v860
        %v862 = vpop.xlane.xlu0 %861
        %v863 = vrcp.pop %v862
        %v864 = vmul.f32 %v859, %v863
        %v865 = vpack.c.bf16 %v864, %v864
        %866 = vrot.lane.b32.xlu0 %v470, 40
        %v867 = vpop.permute.xlu0 %866
        %v869 = vsel %vm474, %v865, 0
        %v872 = vsel %vm539, %v867, 0
        %874 = vmatprep.subr.bf16.mxu0 0
        %875 = vmatpush1.bf16.msra.mxu0 %v872
        %876 = vmatprep.subr.bf16.mxu0 0
        %877 = vmatpush1.bf16.msra.mxu0 0
        %878 = vmatprep.subr.bf16.mxu0 0
        %879 = vmatpush1.bf16.msra.mxu0 0
        %880 = vmatprep.subr.bf16.mxu0 0
        %881 = vmatpush1.bf16.msra.mxu0 0
        %882 = vmatprep.subr.bf16.mxu0 0
        %883 = vmatpush1.bf16.msra.mxu0 0
        %884 = vmatprep.subr.bf16.mxu0 0
        %885 = vmatpush1.bf16.msra.mxu0 0
        %886 = vmatprep.subr.bf16.mxu0 0
        %887 = vmatpush1.bf16.msra.mxu0 0
        %888 = vmatprep.subr.bf16.mxu0 0
        %889 = vmatpush1.bf16.msra.mxu0 0
        %890 = vmatprep.subr.bf16.mxu0 0
        %891 = vmatpush1.bf16.msra.mxu0 0
        %892 = vmatprep.subr.bf16.mxu0 0
        %893 = vmatpush1.bf16.msra.mxu0 0
        %894 = vmatprep.subr.bf16.mxu0 0
        %895 = vmatpush1.bf16.msra.mxu0 0
        %896 = vmatprep.subr.bf16.mxu0 0
        %897 = vmatpush1.bf16.msra.mxu0 0
        %898 = vmatprep.subr.bf16.mxu0 0
        %899 = vmatpush1.bf16.msra.mxu0 0
        %900 = vmatprep.subr.bf16.mxu0 0
        %901 = vmatpush1.bf16.msra.mxu0 0
        %902 = vmatprep.subr.bf16.mxu0 0
        %903 = vmatpush1.bf16.msra.mxu0 0
        %904 = vmatprep.subr.bf16.mxu0 0
        %905 = vmatpush1.bf16.msra.mxu0 0
        %906 = vmatprep.mubr.bf16.mxu0 0
        %907 = vmatmul.mubr.bf16.gmra.mrb[0].mxu0 %v869
        %v908 = vpop.f32.mrb[0].mxu0
        %v909 = vadd.f32 0.0, %v908
        %v910 = vpop.f32.mrb[0].mxu0
        %v911 = vpop.f32.mrb[0].mxu0
        %v912 = vpop.f32.mrb[0].mxu0
        %913 = vdwg.mxu0
        %915 = vrot.lane.b32.xlu0 %v689, 8
        %v916 = vpop.permute.xlu0 %915
        %919 = vrot.lane.b32.xlu0 %v799, 16
        %v920 = vpop.permute.xlu0 %919
        %923 = vrot.lane.b32.xlu0 %v909, 24
        %v924 = vpop.permute.xlu0 %923
        %v926 = vsel %vm474, %v578, %v916
        %vm927 = vcmask 130048
        %v928 = vsel %vm927, %v926, %v920
        %vm929 = vcmask 195584
        %v930 = vsel %vm929, %v928, %v924
        %v931 = vpack.c.bf16 %v930, %v930
        %v932 = vld [vmem:[%s4] sm:$0xf]
        %v933 = vld [vmem:[%s4 + $0x4] sm:$0xf]
        %v934 = vld [vmem:[%s4 + $0x8] sm:$0xf]
        %v935 = vld [vmem:[%s4 + $0xc] sm:$0xf]
        %v936 = vlaneseq
        %v937 = vshrl.u32 %v936, 7
        %v938 = vsub.s32 0, %v937
        %v939 = vrot.slane %v292, %v938
        %v944 = vunpack.c.l.b16 %v932
        %v945 = vunpack.c.l.b16 %v933
        %v946 = vunpack.c.l.b16 %v934
        %v947 = vunpack.c.l.b16 %v935
        %v948 = vpack.c.b16 %v945, %v944
        %v949 = vpack.c.b16 %v947, %v946
        %v953 = vsel %vm295, %v931, 0
        %955 = vmatprep.subr.bf16.mxu0 0
        %956 = vmatpush1.bf16.msra.mxu0 %v948
        %957 = vmatprep.subr.bf16.mxu0 0
        %958 = vmatpush1.bf16.msra.mxu0 %v949
        %959 = vmatprep.subr.bf16.mxu0 0
        %960 = vmatpush1.bf16.msra.mxu0 0
        %961 = vmatprep.subr.bf16.mxu0 0
        %962 = vmatpush1.bf16.msra.mxu0 0
        %963 = vmatprep.subr.bf16.mxu0 0
        %964 = vmatpush1.bf16.msra.mxu0 0
        %965 = vmatprep.subr.bf16.mxu0 0
        %966 = vmatpush1.bf16.msra.mxu0 0
        %967 = vmatprep.subr.bf16.mxu0 0
        %968 = vmatpush1.bf16.msra.mxu0 0
        %969 = vmatprep.subr.bf16.mxu0 0
        %970 = vmatpush1.bf16.msra.mxu0 0
        %971 = vmatprep.subr.bf16.mxu0 0
        %972 = vmatpush1.bf16.msra.mxu0 0
        %973 = vmatprep.subr.bf16.mxu0 0
        %974 = vmatpush1.bf16.msra.mxu0 0
        %975 = vmatprep.subr.bf16.mxu0 0
        %976 = vmatpush1.bf16.msra.mxu0 0
        %977 = vmatprep.subr.bf16.mxu0 0
        %978 = vmatpush1.bf16.msra.mxu0 0
        %979 = vmatprep.subr.bf16.mxu0 0
        %980 = vmatpush1.bf16.msra.mxu0 0
        %981 = vmatprep.subr.bf16.mxu0 0
        %982 = vmatpush1.bf16.msra.mxu0 0
        %983 = vmatprep.subr.bf16.mxu0 0
        %984 = vmatpush1.bf16.msra.mxu0 0
        %985 = vmatprep.subr.bf16.mxu0 0
        %986 = vmatpush1.bf16.msra.mxu0 0
        %987 = vmatprep.mubr.bf16.mxu0 0
        %988 = vmatmul.mubr.bf16.gmra.mrb[0].mxu0 %v953
        %v989 = vpop.f32.mrb[0].mxu0
        %v990 = vadd.f32 %v939, %v989
        %v991 = vpop.f32.mrb[0].mxu0
        %v992 = vpop.f32.mrb[0].mxu0
        %v993 = vpop.f32.mrb[0].mxu0
        %994 = vdwg.mxu0
        %v995 = vadd.f32 %v384, %v990
        %v996 = vsel %vm295, %v995, 0.0
        %997 = vadd.xlane.f32.xlu0 %v996
        %v998 = vpop.xlane.xlu0 %997
        %v999 = vmul.f32 %v998, %v299
        %v1000 = vsub.f32 %v995, %v999
        %v1001 = vmul.f32 %v1000, %v1000
        %v1002 = vsel %vm295, %v1001, 0.0
        %1003 = vadd.xlane.f32.xlu0 %v1002
        %v1004 = vpop.xlane.xlu0 %1003
        %v1005 = vmul.f32 %v1004, %v299
        %v1006 = vadd.f32 %v1005, 1e-05
        %v1007 = vrsqrt.pop %v1006
        %v1008 = vmul.f32 %v1000, %v1007
        %v1009 = vlaneseq
        %v1010 = vshrl.u32 %v1009, 7
        %v1011 = vsub.s32 0, %v1010
        %v1012 = vrot.slane %v293, %v1011
        %v1013 = vmul.f32 %v1008, %v1012
        %v1014 = vlaneseq
        %v1015 = vshrl.u32 %v1014, 7
        %v1016 = vsub.s32 0, %v1015
        %v1017 = vrot.slane %v294, %v1016
        %v1018 = vadd.f32 %v1013, %v1017
        %1019 = vst.msk [vmem:[%s283] sm:$0xff] %vm295, %v1018
        %s1020 = sand.u32 %s142, 1
        %s1021 = scalar_lea.sflag [#allocation4], %s1020
        %s1022 = sand.u32 %s142, 1
        %s1023 = smul.addr %s1022, 8
        %s1024 = scalar_lea.vmem [#allocation10], %s1023
        // Predicated region
        $region57: #{transformer_encoder.1} parent=39 // pred_check
          %p1025 = pneg %p152
        $region58: #{transformer_encoder.1} parent=39 // pred_check_branch
          %1027 = sbr.rel (%p1025) target = $region60
        $region59: #{transformer_encoder.1} parent=39 // pred_region
          %s1029 = ssub.s32 128, 128
          %1030 = vsyncadd %s1021, %s1029
          %s1031 = smul.addr %s24, 128
          %s1032 = scalar_lea.hbm %s5, %s1031
          %s1034 = sshll.u32 %s1024, 4
          %s1035 = int_to_ptr.vmem [resolvable:$true] %s1034
          %1037 = dma.vmem_to_hbm [thread:$0]  %s1035, 128, %s1032, %s1021
        $region60: #{transformer_encoder.1} parent=39 // pred_fallthru
          _
      $region40: #{transformer_encoder.1} parent=5 // pred_fallthru
        _
      %p1038 = scmp.le.s32.totalorder 2, %s19
      // Predicated region
      $region61: #{transformer_encoder.1} parent=5 // pred_check
        %p1039 = pneg %p1038
      $region62: #{transformer_encoder.1} parent=5 // pred_check_branch
        %1041 = sbr.rel (%p1039) target = $region64
      $region63: #{transformer_encoder.1} parent=5 // pred_region
        %s1042 = ssub.s32 %s19, 2
        // Predicated region
        $region65: #{transformer_encoder.1} parent=63 // pred_check
          %p1043 = pneg %p158
        $region66: #{transformer_encoder.1} parent=63 // pred_check_branch
          %1045 = sbr.rel (%p1043) target = $region68
        $region67: #{transformer_encoder.1} parent=63 // pred_region
          %s1046 = sand.u32 %s143, 1
          %s1047 = scalar_lea.sflag [#allocation4], %s1046
          %s1048 = sand.u32 %s143, 1
          %s1049 = smul.addr %s1048, 8
          %s1050 = scalar_lea.vmem [#allocation10], %s1049
          %1051 = dma.done %s1047, 128
        $region68: #{transformer_encoder.1} parent=63 // pred_fallthru
          _
      $region64: #{transformer_encoder.1} parent=5 // pred_fallthru
        _
    $region6: #{transformer_encoder.1} parent=1 // loop_footer
      %s23 = sadd.s32 1, %s19
    $region7: #{transformer_encoder.1} parent=1 // loop_footer_branch
      %18 = sbr.rel target = $region3
    $region8: #{transformer_encoder.1} parent=1 // loop_exit
      _
    %1052 = vsyncpa [#allocation3], 1
    %s1053 = scalar_lea.sflag [#allocation3], 1
    %1054 = vsyncpa %s1053, 1
    %1055 = vsyncpa [#allocation6], 1
    %1056 = vsyncpa [#allocation9], 1
    %1057 = vsyncpa [#allocation4], 1
    %s1058 = scalar_lea.sflag [#allocation4], 1
    %1059 = vsyncpa %s1058, 1

</llo_original>
